<compile_context>
chip_gen: v7x
topology: tpu7x:2x2x1
jax: 0.10.0
libtpu: 0.0.40
codegen_flags: <defaults>
</compile_context>

<pallas_src>
import functools

import jax
import jax.numpy as jnp
from jax.experimental import pallas as pl
from jax.experimental.pallas import tpu as pltpu

_D_IN_PAD = 16   # bf16 sublane minimum, covers in_dim = 8
_D_OUT_PAD = 8   # f32 sublane minimum, covers out_dim = 4


def _dense_mlp_kernel(n_layers, d_in, d_out, xT_ref, w_ref, b_ref, o_ref):
    """Transposed MLP body (batch rides the lane axis).

    xT_ref: (d_in, tile_m) bf16  -- input, transposed, rows >= 8 are zero
    w_ref : (L, D, D)      bf16  -- packed, zero-padded weights (out, in) per layer
    b_ref : (L, D, 1)      f32   -- packed, zero-padded biases
    o_ref : (d_out, tile_m) f32  -- output, rows >= 4 are zero
    """
    h = xT_ref[...]                                     # bf16, lane-dense
    for l in range(n_layers):                           # static -> unrolled
        w = w_ref[l]                                    # (D, D) bf16, VMEM-resident
        if l == 0:
            w = w[:, :d_in]                             # contract only the real+pad 16 cols
        acc = jnp.dot(w, h, preferred_element_type=jnp.float32)   # MXU, f32 acc
        acc = acc + b_ref[l]                            # bias add in f32 (v5e-safe)
        if l < n_layers - 1:
            h = jnp.maximum(acc, 0.0).astype(jnp.bfloat16)  # ReLU f32, back to bf16
        else:
            o_ref[...] = acc[:d_out, :]                 # unmasked lane-dense store


def pack_params(weights, biases):
    """One-time packing (do NOT call per forward).

    weights[l]: (out_l, in_l) f32 torch layout; biases[l]: (out_l,).
    Returns (w_packed (L,D,D) bf16, b_packed (L,D,1) f32), zero-padded,
    D = multiple of 16 covering all layer dims.
    """
    L = len(weights)
    in_dim = weights[0].shape[1]
    dims = [in_dim] + [w.shape[0] for w in weights]
    D = ((max(dims) + 15) // 16) * 16
    w_packed = jnp.zeros((L, D, D), jnp.float32)
    b_packed = jnp.zeros((L, D, 1), jnp.float32)
    for l, (w, b) in enumerate(zip(weights, biases)):
        o, i = w.shape
        w_packed = w_packed.at[l, :o, :i].set(w)
        b_packed = b_packed.at[l, :o, 0].set(b)
    return w_packed.astype(jnp.bfloat16), b_packed


def _pick_tile_m(batch):
    """Big tiles for DMA efficiency, but keep >=2 grid steps when batch allows
    (so the ("parallel",) axis shards across v7x's two TensorCores)."""
    b128 = pl.cdiv(batch, 128) * 128
    half = pl.cdiv(pl.cdiv(b128, 2), 128) * 128
    return int(min(2048, max(128, half)))


@functools.partial(jax.jit, static_argnames=("out_dim", "tile_m"))
def _forward_impl(x, w_packed, b_packed, *, out_dim, tile_m):
    B, in_dim = x.shape
    L, D, _ = w_packed.shape
    d_in = _D_IN_PAD
    d_out = _D_OUT_PAD
    assert in_dim <= d_in and out_dim <= d_out and D >= d_in

    B_pad = pl.cdiv(B, tile_m) * tile_m
    n_tiles = B_pad // tile_m

    # Transpose + zero-pad x so batch is the lane axis; fused into one pass by jit.
    xT = jnp.zeros((d_in, B_pad), jnp.bfloat16)
    xT = xT.at[:in_dim, :B].set(x.T.astype(jnp.bfloat16))

    kernel = functools.partial(_dense_mlp_kernel, L, d_in, d_out)

    flops = 2 * B_pad * D * (d_in + (L - 1) * D)
    bytes_accessed = (d_in * B_pad * 2 + L * D * D * 2 + L * D * 4
                      + d_out * B_pad * 4)

    out = pl.pallas_call(
        kernel,
        out_shape=jax.ShapeDtypeStruct((d_out, B_pad), jnp.float32),
        grid_spec=pltpu.PrefetchScalarGridSpec(
            num_scalar_prefetch=0,
            grid=(n_tiles,),
            in_specs=[
                pl.BlockSpec((d_in, tile_m), lambda i: (0, i)),   # x^T batch tile
                pl.BlockSpec((L, D, D), lambda i: (0, 0, 0)),     # resident packed weights
                pl.BlockSpec((L, D, 1), lambda i: (0, 0, 0)),     # resident packed biases
            ],
            out_specs=pl.BlockSpec((d_out, tile_m), lambda i: (0, i)),
        ),
        compiler_params=pltpu.CompilerParams(
            dimension_semantics=("parallel",),
        ),
        cost_estimate=pl.CostEstimate(
            flops=flops, transcendentals=0, bytes_accessed=bytes_accessed),
    )(xT, w_packed, b_packed)

    return out[:out_dim, :B].T          # back to torch layout (B, out_dim); fused by jit


def dense_model_forward(x, w_packed, b_packed, *, out_dim=4, tile_m=None):
    """x: (B, 8) f32.  w_packed/b_packed: outputs of pack_params (call once)."""
    if tile_m is None:
        tile_m = _pick_tile_m(x.shape[0])
    assert tile_m % 128 == 0
    return _forward_impl(x, w_packed, b_packed, out_dim=out_dim, tile_m=tile_m)


def init_params(key, n_hidden_layers, hidden_dim):
    """Torch-style init/layout: weight (out, in), bias (out,), U(-1/sqrt(fan_in), +)."""
    dims = [8] + [hidden_dim] * (n_hidden_layers + 1) + [4]
    weights, biases = [], []
    for i in range(len(dims) - 1):
        in_d, out_d = dims[i], dims[i + 1]
        key, kw, kb = jax.random.split(key, 3)
        bound = 1.0 / (in_d ** 0.5)
        weights.append(jax.random.uniform(kw, (out_d, in_d), jnp.float32, -bound, bound))
        biases.append(jax.random.uniform(kb, (out_d,), jnp.float32, -bound, bound))
    return weights, biases


def reference_forward(x, weights, biases):
    """Pure-JAX reference mimicking the kernel's bf16-input / f32-accumulate math."""
    h = x.astype(jnp.bfloat16).astype(jnp.float32)
    L = len(weights)
    for l, (w, b) in enumerate(zip(weights, biases)):
        wq = w.astype(jnp.bfloat16).astype(jnp.float32)
        h = h @ wq.T + b
        if l < L - 1:
            h = jnp.maximum(h, 0.0)
            h = h.astype(jnp.bfloat16).astype(jnp.float32)
    return h


if __name__ == "__main__":
    # TODO(synk): only the forward pass is implemented; get_loss_default/get_loss_sim
    # (torch.cat of batch dict + MSE) are training helpers, not part of forward().
    n_hidden_layers = 2
    hidden_dim = 32
    batch = 1024          # auto tile_m=512 -> grid of 2 parallel steps (both v7x TCs)

    key = jax.random.PRNGKey(0)
    key, kx = jax.random.split(key)
    x = jax.random.normal(kx, (batch, 8), jnp.float32)
    weights, biases = init_params(key, n_hidden_layers, hidden_dim)

    # One-time packing; repeated forward calls reuse the packed params + jitted fn.
    w_packed, b_packed = pack_params(weights, biases)

    y = dense_model_forward(x, w_packed, b_packed)
    y = jax.block_until_ready(y)
    # Second call exercises the cached jit path (no re-packing, no re-tracing).
    y2 = jax.block_until_ready(dense_model_forward(x, w_packed, b_packed))

    y_ref = reference_forward(x, weights, biases)
    assert y.shape == (batch, 4)
    assert jnp.allclose(y, y_ref, atol=2e-3, rtol=2e-3), "mismatch vs JAX reference"
    assert jnp.allclose(y, y2), "non-deterministic across calls"

    print("KERNEL_OK")
</pallas_src>

<mosaic_0001>
module attributes {stable_mosaic.version = 11 : i64} {
  func.func @_dense_mlp_kernel(%arg0: i32, %arg1: memref<16x512xbf16, #tpu.memory_space<vmem>>, %arg2: memref<4x32x32xbf16, #tpu.memory_space<vmem>>, %arg3: memref<4x32x1xf32, #tpu.memory_space<vmem>>, %arg4: memref<8x512xf32, #tpu.memory_space<vmem>>) attributes {dimension_semantics = [#tpu.dimension_semantics<parallel>], iteration_bounds = array<i64: 2>, scalar_prefetch = 0 : i64, scratch_operands = 0 : i64, tpu.core_type = #tpu.core_type<tc>, window_params = [{transform_indices = @transform_0, window_bounds = array<i64: 16, 512>}, {pipeline_mode = #tpu.pipeline_mode<synchronous>, transform_indices = @transform_1, window_bounds = array<i64: 4, 32, 32>}, {pipeline_mode = #tpu.pipeline_mode<synchronous>, transform_indices = @transform_2, window_bounds = array<i64: 4, 32, 1>}, {transform_indices = @transform_3, window_bounds = array<i64: 8, 512>}]} {
    %c0 = arith.constant 0 : index
    %c0_0 = arith.constant 0 : index
    %0 = vector.load %arg1[%c0, %c0_0] : memref<16x512xbf16, #tpu.memory_space<vmem>>, vector<16x512xbf16>
    %c0_1 = arith.constant 0 : index
    %c0_2 = arith.constant 0 : index
    %c0_3 = arith.constant 0 : index
    %1 = vector.load %arg2[%c0_1, %c0_2, %c0_3] : memref<4x32x32xbf16, #tpu.memory_space<vmem>>, vector<1x32x32xbf16>
    %2 = vector.shape_cast %1 : vector<1x32x32xbf16> to vector<32x32xbf16>
    %3 = vector.extract_strided_slice %2 {offsets = [0, 0], sizes = [32, 16], strides = [1, 1]} : vector<32x32xbf16> to vector<32x16xbf16>
    %cst = arith.constant dense<0.000000e+00> : vector<32x512xf32>
    %4 = tpu.matmul %3, %0, %cst {dimension_numbers = #tpu.dot_dimension_numbers<[1], [0], [0], [1], [0, 0, 1, 1], [], []>} : vector<32x16xbf16>, vector<16x512xbf16>, vector<32x512xf32> -> vector<32x512xf32>
    %c0_4 = arith.constant 0 : index
    %c0_5 = arith.constant 0 : index
    %c0_6 = arith.constant 0 : index
    %5 = vector.load %arg3[%c0_4, %c0_5, %c0_6] : memref<4x32x1xf32, #tpu.memory_space<vmem>>, vector<1x32x1xf32>
    %6 = vector.shape_cast %5 : vector<1x32x1xf32> to vector<32x1xf32>
    %7 = vector.broadcast %6 : vector<32x1xf32> to vector<32x512xf32>
    %8 = arith.addf %4, %7 : vector<32x512xf32>
    %cst_7 = arith.constant 0.000000e+00 : f32
    %9 = vector.broadcast %cst_7 : f32 to vector<32x512xf32>
    %10 = arith.maximumf %8, %9 : vector<32x512xf32>
    %11 = arith.truncf %10 : vector<32x512xf32> to vector<32x512xbf16>
    %c1 = arith.constant 1 : index
    %c0_8 = arith.constant 0 : index
    %c0_9 = arith.constant 0 : index
    %12 = vector.load %arg2[%c1, %c0_8, %c0_9] : memref<4x32x32xbf16, #tpu.memory_space<vmem>>, vector<1x32x32xbf16>
    %13 = vector.shape_cast %12 : vector<1x32x32xbf16> to vector<32x32xbf16>
    %cst_10 = arith.constant dense<0.000000e+00> : vector<32x512xf32>
    %14 = tpu.matmul %13, %11, %cst_10 {dimension_numbers = #tpu.dot_dimension_numbers<[1], [0], [0], [1], [0, 0, 1, 1], [], []>} : vector<32x32xbf16>, vector<32x512xbf16>, vector<32x512xf32> -> vector<32x512xf32>
    %c1_11 = arith.constant 1 : index
    %c0_12 = arith.constant 0 : index
    %c0_13 = arith.constant 0 : index
    %15 = vector.load %arg3[%c1_11, %c0_12, %c0_13] : memref<4x32x1xf32, #tpu.memory_space<vmem>>, vector<1x32x1xf32>
    %16 = vector.shape_cast %15 : vector<1x32x1xf32> to vector<32x1xf32>
    %17 = vector.broadcast %16 : vector<32x1xf32> to vector<32x512xf32>
    %18 = arith.addf %14, %17 : vector<32x512xf32>
    %cst_14 = arith.constant 0.000000e+00 : f32
    %19 = vector.broadcast %cst_14 : f32 to vector<32x512xf32>
    %20 = arith.maximumf %18, %19 : vector<32x512xf32>
    %21 = arith.truncf %20 : vector<32x512xf32> to vector<32x512xbf16>
    %c2 = arith.constant 2 : index
    %c0_15 = arith.constant 0 : index
    %c0_16 = arith.constant 0 : index
    %22 = vector.load %arg2[%c2, %c0_15, %c0_16] : memref<4x32x32xbf16, #tpu.memory_space<vmem>>, vector<1x32x32xbf16>
    %23 = vector.shape_cast %22 : vector<1x32x32xbf16> to vector<32x32xbf16>
    %cst_17 = arith.constant dense<0.000000e+00> : vector<32x512xf32>
    %24 = tpu.matmul %23, %21, %cst_17 {dimension_numbers = #tpu.dot_dimension_numbers<[1], [0], [0], [1], [0, 0, 1, 1], [], []>} : vector<32x32xbf16>, vector<32x512xbf16>, vector<32x512xf32> -> vector<32x512xf32>
    %c2_18 = arith.constant 2 : index
    %c0_19 = arith.constant 0 : index
    %c0_20 = arith.constant 0 : index
    %25 = vector.load %arg3[%c2_18, %c0_19, %c0_20] : memref<4x32x1xf32, #tpu.memory_space<vmem>>, vector<1x32x1xf32>
    %26 = vector.shape_cast %25 : vector<1x32x1xf32> to vector<32x1xf32>
    %27 = vector.broadcast %26 : vector<32x1xf32> to vector<32x512xf32>
    %28 = arith.addf %24, %27 : vector<32x512xf32>
    %cst_21 = arith.constant 0.000000e+00 : f32
    %29 = vector.broadcast %cst_21 : f32 to vector<32x512xf32>
    %30 = arith.maximumf %28, %29 : vector<32x512xf32>
    %31 = arith.truncf %30 : vector<32x512xf32> to vector<32x512xbf16>
    %c3 = arith.constant 3 : index
    %c0_22 = arith.constant 0 : index
    %c0_23 = arith.constant 0 : index
    %32 = vector.load %arg2[%c3, %c0_22, %c0_23] : memref<4x32x32xbf16, #tpu.memory_space<vmem>>, vector<1x32x32xbf16>
    %33 = vector.shape_cast %32 : vector<1x32x32xbf16> to vector<32x32xbf16>
    %cst_24 = arith.constant dense<0.000000e+00> : vector<32x512xf32>
    %34 = tpu.matmul %33, %31, %cst_24 {dimension_numbers = #tpu.dot_dimension_numbers<[1], [0], [0], [1], [0, 0, 1, 1], [], []>} : vector<32x32xbf16>, vector<32x512xbf16>, vector<32x512xf32> -> vector<32x512xf32>
    %c3_25 = arith.constant 3 : index
    %c0_26 = arith.constant 0 : index
    %c0_27 = arith.constant 0 : index
    %35 = vector.load %arg3[%c3_25, %c0_26, %c0_27] : memref<4x32x1xf32, #tpu.memory_space<vmem>>, vector<1x32x1xf32>
    %36 = vector.shape_cast %35 : vector<1x32x1xf32> to vector<32x1xf32>
    %37 = vector.broadcast %36 : vector<32x1xf32> to vector<32x512xf32>
    %38 = arith.addf %34, %37 : vector<32x512xf32>
    %39 = vector.extract_strided_slice %38 {offsets = [0, 0], sizes = [8, 512], strides = [1, 1]} : vector<32x512xf32> to vector<8x512xf32>
    %c0_28 = arith.constant 0 : index
    %c0_29 = arith.constant 0 : index
    %40 = vector.load %arg4[%c0_28, %c0_29] : memref<8x512xf32, #tpu.memory_space<vmem>>, vector<8x512xf32>
    tpu.vector_store %arg4[%c0_28, %c0_29], %39 {strides = array<i32>} : memref<8x512xf32, #tpu.memory_space<vmem>>, vector<8x512xf32>,
    return
  }
  func.func @transform_0(%arg0: i32) -> (i32, i32) {
    %c0_i32 = arith.constant 0 : i32
    %c0_i32_0 = arith.constant 0 : i32
    return %c0_i32, %arg0 : i32, i32
  }
  func.func @transform_1(%arg0: i32) -> (i32, i32, i32) {
    %c0_i32 = arith.constant 0 : i32
    %c0_i32_0 = arith.constant 0 : i32
    %c0_i32_1 = arith.constant 0 : i32
    %c0_i32_2 = arith.constant 0 : i32
    return %c0_i32, %c0_i32_0, %c0_i32_1 : i32, i32, i32
  }
  func.func @transform_2(%arg0: i32) -> (i32, i32, i32) {
    %c0_i32 = arith.constant 0 : i32
    %c0_i32_0 = arith.constant 0 : i32
    %c0_i32_1 = arith.constant 0 : i32
    %c0_i32_2 = arith.constant 0 : i32
    return %c0_i32, %c0_i32_0, %c0_i32_1 : i32, i32, i32
  }
  func.func @transform_3(%arg0: i32) -> (i32, i32) {
    %c0_i32 = arith.constant 0 : i32
    %c0_i32_0 = arith.constant 0 : i32
    return %c0_i32, %arg0 : i32, i32
  }
}

</mosaic_0001>

<llo_original>
// kernel: _forward_impl.1
$region0: #{_forward_impl.1}
  #allocation0 [shape = 'u32[]', space=smem, size = 0x4, offset = 0x4, fixed_abs, tag = 'smem constant byte address 0x4 - core index']
  #allocation1 [shape = 'u32[144,128]{1,0:T(1,128)}', space=vmem, size = 0x12000, scoped, tag = 'internal scratch']
  %s0 = inlined_call_operand.vmem [shape: bf16[16,1024], index: 0, kind: input, shape index: {}]
  %s1 = inlined_call_operand.vmem [shape: bf16[4,32,32], index: 1, kind: input, shape index: {}]
  %s2 = inlined_call_operand.vmem [shape: f32[4,32,1], index: 2, kind: input, shape index: {}]
  %s3 = inlined_call_operand.vmem [shape: f32[8,1024], index: 3, kind: output, shape index: {}]
  %s4 = sld [smem:[#allocation0]]
  $region68: #{_forward_impl.1} parent=0
    _
  %s6 = ssub.s32 1, %s4
  %s7 = scalar_select 0, %s6, %s4
  $region1: #{_forward_impl.1} parent=0
    #allocation2 [shape = 'u8[32768]{0}', space=vmem, size = 0x8000, scoped, tag = 'input window, operand 0']
    loop: start=0, step=1, limit=4
    $region2: #{_forward_impl.1} parent=1 // loop_pre_header
      _
    $region3: #{_forward_impl.1} parent=1 // loop_header
      %s9 = sphi 0, %s13
      %p10 = scmp.ge.s32.totalorder %s9, 4
      %s19 = sphi 0, %s21
      %s22 = sphi 0, %s19
      %s23 = sphi 0, %s22
      %s39 = sphi 0, %s23
      %s43 = sphi 0, %s43
      %s45 = sphi 0, %s43
      %s46 = sphi 0, %s45
      %s60 = sphi 0, %s46
      %s64 = sphi 0, %s64
      %s66 = sphi 0, %s64
      %s67 = sphi 0, %s66
      %s81 = sphi 0, %s67
      %s87 = sphi 0, %s89
      %s90 = sphi 0, %s87
      %s91 = sphi 0, %s90
      %s107 = sphi 0, %s91
    $region4: #{_forward_impl.1} parent=1 // loop_header_branch
      %12 = sbr.rel (%p10) target = $region8
    $region5: #{_forward_impl.1} parent=1 // loop_body
      %s14 = ssub.s32 %s9, 1
      %s15 = ssub.s32 %s9, 2
      %s16 = sadd.s32 %s9, 1
      %s17 = ssub.s32 %s9, %s16
      %p18 = scmp.eq.s32.totalorder %s17, 0
      %s20 = sadd.s32 %s19, 1
      %s21 = scalar_select %p18, %s19, %s20
      %p24 = pneg %p18
      %p25 = scmp.eq.s32.totalorder %s9, 1
      %p26 = por %p24, %p25
      %p27 = scmp.ne.s32.totalorder %s19, %s22
      %p28 = scmp.eq.s32.totalorder %s9, 0
      %p29 = por %p27, %p28
      %p30 = scmp.ne.s32.totalorder %s19, %s22
      %p31 = scmp.eq.s32.totalorder %s14, 1
      %p32 = por %p30, %p31
      %p33 = scmp.ne.s32.totalorder %s22, %s23
      %p34 = scmp.eq.s32.totalorder %s14, 0
      %p35 = por %p33, %p34
      %p36 = scmp.ne.s32.totalorder %s22, %s23
      %p37 = scmp.eq.s32.totalorder %s15, 1
      %p38 = por %p36, %p37
      %p40 = scmp.ne.s32.totalorder %s23, %s39
      %p41 = scmp.eq.s32.totalorder %s15, 0
      %p42 = por %p40, %p41
      %s44 = sadd.s32 %s43, 1
      %p47 = scmp.eq.s32.totalorder %s9, 1
      %p48 = scmp.ne.s32.totalorder %s43, %s45
      %p49 = scmp.eq.s32.totalorder %s9, 0
      %p50 = por %p48, %p49
      %p51 = scmp.ne.s32.totalorder %s43, %s45
      %p52 = scmp.eq.s32.totalorder %s14, 1
      %p53 = por %p51, %p52
      %p54 = scmp.ne.s32.totalorder %s45, %s46
      %p55 = scmp.eq.s32.totalorder %s14, 0
      %p56 = por %p54, %p55
      %p57 = scmp.ne.s32.totalorder %s45, %s46
      %p58 = scmp.eq.s32.totalorder %s15, 1
      %p59 = por %p57, %p58
      %p61 = scmp.ne.s32.totalorder %s46, %s60
      %p62 = scmp.eq.s32.totalorder %s15, 0
      %p63 = por %p61, %p62
      %s65 = sadd.s32 %s64, 1
      %p68 = scmp.eq.s32.totalorder %s9, 1
      %p69 = scmp.ne.s32.totalorder %s64, %s66
      %p70 = scmp.eq.s32.totalorder %s9, 0
      %p71 = por %p69, %p70
      %p72 = scmp.ne.s32.totalorder %s64, %s66
      %p73 = scmp.eq.s32.totalorder %s14, 1
      %p74 = por %p72, %p73
      %p75 = scmp.ne.s32.totalorder %s66, %s67
      %p76 = scmp.eq.s32.totalorder %s14, 0
      %p77 = por %p75, %p76
      %p78 = scmp.ne.s32.totalorder %s66, %s67
      %p79 = scmp.eq.s32.totalorder %s15, 1
      %p80 = por %p78, %p79
      %p82 = scmp.ne.s32.totalorder %s67, %s81
      %p83 = scmp.eq.s32.totalorder %s15, 0
      %p84 = por %p82, %p83
      %s85 = ssub.s32 %s9, %s16
      %p86 = scmp.eq.s32.totalorder %s85, 0
      %s88 = sadd.s32 %s87, 1
      %s89 = scalar_select %p86, %s87, %s88
      %p92 = pneg %p86
      %p93 = scmp.eq.s32.totalorder %s9, 1
      %p94 = por %p92, %p93
      %p95 = scmp.ne.s32.totalorder %s87, %s90
      %p96 = scmp.eq.s32.totalorder %s9, 0
      %p97 = por %p95, %p96
      %p98 = scmp.ne.s32.totalorder %s87, %s90
      %p99 = scmp.eq.s32.totalorder %s14, 1
      %p100 = por %p98, %p99
      %p101 = scmp.ne.s32.totalorder %s90, %s91
      %p102 = scmp.eq.s32.totalorder %s14, 0
      %p103 = por %p101, %p102
      %p104 = scmp.ne.s32.totalorder %s90, %s91
      %p105 = scmp.eq.s32.totalorder %s15, 1
      %p106 = por %p104, %p105
      %p108 = scmp.ne.s32.totalorder %s91, %s107
      %p109 = scmp.eq.s32.totalorder %s15, 0
      %p110 = por %p108, %p109
      %p111 = scmp.le.s32.totalorder 1, %s9
      %p112 = scmp.lt.s32.totalorder %s9, 3
      %p113 = pnand %p111, %p112
      %p114 = pneg %p113
      // Predicated region
      $region9: #{_forward_impl.1} parent=5 // pred_check
        _
      $region10: #{_forward_impl.1} parent=5 // pred_check_branch
        %116 = sbr.rel (%p113) target = $region12
      $region11: #{_forward_impl.1} parent=5 // pred_region
        %s117 = ssub.s32 %s9, 1
        // Predicated region
        $region13: #{_forward_impl.1} parent=11 // pred_check
          %p118 = pneg %p56
        $region14: #{_forward_impl.1} parent=11 // pred_check_branch
          %120 = sbr.rel (%p118) target = $region16
        $region15: #{_forward_impl.1} parent=11 // pred_region
          _
        $region16: #{_forward_impl.1} parent=11 // pred_fallthru
          _
        // Predicated region
        $region17: #{_forward_impl.1} parent=11 // pred_check
          %p121 = pneg %p77
        $region18: #{_forward_impl.1} parent=11 // pred_check_branch
          %123 = sbr.rel (%p121) target = $region20
        $region19: #{_forward_impl.1} parent=11 // pred_region
          _
        $region20: #{_forward_impl.1} parent=11 // pred_fallthru
          _
      $region12: #{_forward_impl.1} parent=5 // pred_fallthru
        _
      %p124 = scmp.lt.s32.totalorder %s9, 2
      // Predicated region
      $region21: #{_forward_impl.1} parent=5 // pred_check
        %p125 = pneg %p124
      $region22: #{_forward_impl.1} parent=5 // pred_check_branch
        %127 = sbr.rel (%p125) target = $region24
      $region23: #{_forward_impl.1} parent=5 // pred_region
        // Predicated region
        $region25: #{_forward_impl.1} parent=23 // pred_check
          %p128 = pneg %p29
        $region26: #{_forward_impl.1} parent=23 // pred_check_branch
          %130 = sbr.rel (%p128) target = $region28
        $region27: #{_forward_impl.1} parent=23 // pred_region
          %s131 = sand.u32 %s19, 1
          %s132 = sand.u32 %s19, 1
          %s133 = smul.addr %s132, 32
          %s134 = scalar_lea.vmem [#allocation2], %s133
          %s135 = smul.u32 4, %s9
          %s136 = smul.addr %s135, 4
          %s137 = scalar_lea.vmem %s0, %s136
          // Predicated region
          $region29: #{_forward_impl.1} parent=27 // pred_check
            _
          $region30: #{_forward_impl.1} parent=27 // pred_check_branch
            %139 = sbr.rel (0) target = $region32
          $region31: #{_forward_impl.1} parent=27 // pred_region
            // Predicated region
            $region33: #{_forward_impl.1} parent=31 // pred_check
              _
            $region34: #{_forward_impl.1} parent=31 // pred_check_branch
              %141 = sbr.rel (0) target = $region36
            $region35: #{_forward_impl.1} parent=31 // pred_region
              loop: start=0, step=1, limit=1
              $region37: #{_forward_impl.1} parent=35 // loop_pre_header
                _
              $region38: #{_forward_impl.1} parent=35 // loop_header
                %s143 = sphi 0, %s147
                %p144 = scmp.ge.s32.totalorder %s143, 1
                %s148 = sphi %s137, %s137
                %s149 = sphi %s134, %s134
              $region39: #{_forward_impl.1} parent=35 // loop_header_branch
                %146 = sbr.rel (%p144) target = $region43
              $region40: #{_forward_impl.1} parent=35 // loop_body
                %v150 = vld [vmem:[%s148] sm:$0xff]
                %151 = vst [vmem:[%s149] sm:$0xff] %v150
                %v152 = vld [vmem:[%s148 + $0x8] sm:$0xff]
                %153 = vst [vmem:[%s149 + $0x8] sm:$0xff] %v152
                %v154 = vld [vmem:[%s148 + $0x20] sm:$0xff]
                %155 = vst [vmem:[%s149 + $0x10] sm:$0xff] %v154
                %v156 = vld [vmem:[%s148 + $0x28] sm:$0xff]
                %157 = vst [vmem:[%s149 + $0x18] sm:$0xff] %v156
              $region41: #{_forward_impl.1} parent=35 // loop_footer
                %s147 = sadd.s32 1, %s143
              $region42: #{_forward_impl.1} parent=35 // loop_footer_branch
                %142 = sbr.rel target = $region38
              $region43: #{_forward_impl.1} parent=35 // loop_exit
                _
            $region36: #{_forward_impl.1} parent=31 // pred_fallthru
              _
            // Predicated region
            $region44: #{_forward_impl.1} parent=31 // pred_check
              _
            $region45: #{_forward_impl.1} parent=31 // pred_check_branch
              %159 = sbr.rel target = $region47
            $region46: #{_forward_impl.1} parent=31 // pred_region
              _
            $region47: #{_forward_impl.1} parent=31 // pred_fallthru
              _
          $region32: #{_forward_impl.1} parent=27 // pred_fallthru
            _
          %160 = vnop
        $region28: #{_forward_impl.1} parent=23 // pred_fallthru
          _
      $region24: #{_forward_impl.1} parent=5 // pred_fallthru
        _
      %p161 = scmp.le.s32.totalorder 1, %s9
      %p162 = scmp.lt.s32.totalorder %s9, 3
      %p163 = pnand %p161, %p162
      %p164 = pneg %p163
      // Predicated region
      $region48: #{_forward_impl.1} parent=5 // pred_check
        _
      $region49: #{_forward_impl.1} parent=5 // pred_check_branch
        %166 = sbr.rel (%p163) target = $region51
      $region50: #{_forward_impl.1} parent=5 // pred_region
        %s167 = ssub.s32 %s9, 1
        %s168 = sand.u32 %s22, 1
        %s169 = sand.u32 %s22, 1
        %s170 = smul.addr %s169, 32
        %s171 = scalar_lea.vmem [#allocation2], %s170
        // Predicated region
        $region52: #{_forward_impl.1} parent=50 // pred_check
          %p172 = pneg %p35
        $region53: #{_forward_impl.1} parent=50 // pred_check_branch
          %174 = sbr.rel (%p172) target = $region55
        $region54: #{_forward_impl.1} parent=50 // pred_region
          _
        $region55: #{_forward_impl.1} parent=50 // pred_fallthru
          _
        %s175 = sand.u32 %s22, 1
        %s176 = sand.u32 %s22, 1
        %s177 = smul.addr %s176, 32
        %s178 = scalar_lea.vmem [#allocation2], %s177
        %p179 = pneg %p35
        %p180 = pneg %p32
        %p181 = pneg %p56
        %p182 = pneg %p53
        %p183 = pneg %p77
        %p184 = pneg %p74
        %p185 = pneg %p103
        %p186 = pneg %p100
        %s187 = smul.u32 4, %s14
        %p188 = scmp.lt.s32.totalorder %s187, 7
        %s189 = scalar_select %p188, %s187, 7
        %s190 = smul.addr %s189, 8
        %s191 = scalar_lea.vmem %s3, %s190
        %s192 = smul.u32 4, %s14
        %s193 = smul.u32 4, %s14
        %p194 = scmp.lt.s32.totalorder %s193, 7
        %s195 = scalar_select %p194, %s193, 7
        %s196 = smul.addr %s195, 8
        %s197 = scalar_lea.vmem %s3, %s196
        %s198 = smul.u32 4, %s14
        %v200 = vld [vmem:[%s171] sm:$0xff]
        %v201 = vld [vmem:[%s171 + $0x8] sm:$0xff]
        %v202 = vld [vmem:[%s171 + $0x10] sm:$0xff]
        %v203 = vld [vmem:[%s171 + $0x18] sm:$0xff]
        %v204 = vld [vmem:[%s1] sm:$0xf]
        %v205 = vld [vmem:[%s1 + $0x4] sm:$0xf]
        %v206 = vld [vmem:[%s1 + $0x8] sm:$0xf]
        %v207 = vld [vmem:[%s1 + $0xc] sm:$0xf]
        %v208 = vld [vmem:[%s2] sm:$0xff]
        %v209 = vld [vmem:[%s2 + $0x8] sm:$0xff]
        %v210 = vld [vmem:[%s2 + $0x10] sm:$0xff]
        %v211 = vld [vmem:[%s2 + $0x18] sm:$0xff]
        %213 = vset.pattern.permute.xlu0 0
        %214 = vperm.xlu0 %213, %v208
        %v215 = vpop.permute.xlu0 %214
        %218 = vset.pattern.permute.xlu0 0
        %219 = vperm.xlu0 %218, %v209
        %v220 = vpop.permute.xlu0 %219
        %223 = vset.pattern.permute.xlu0 0
        %224 = vperm.xlu0 %223, %v210
        %v225 = vpop.permute.xlu0 %224
        %228 = vset.pattern.permute.xlu0 0
        %229 = vperm.xlu0 %228, %v211
        %v230 = vpop.permute.xlu0 %229
        %v236 = vunpack.c.l.b16 %v204
        %v237 = vunpack.c.l.b16 %v205
        %v238 = vunpack.c.l.b16 %v206
        %v239 = vunpack.c.l.b16 %v207
        %v240 = vpack.c.b16 %v237, %v236
        %v241 = vpack.c.b16 %v239, %v238
        %v246 = vunpack.c.l.b16 %v200
        %v247 = vunpack.c.h.b16 %v200
        %v248 = vunpack.c.l.b16 %v201
        %v249 = vunpack.c.h.b16 %v201
        %v250 = vunpack.c.l.b16 %v202
        %v251 = vunpack.c.h.b16 %v202
        %v252 = vunpack.c.l.b16 %v203
        %v253 = vunpack.c.h.b16 %v203
        %v254 = vpack.c.b16 %v250, %v246
        %v255 = vpack.c.b16 %v251, %v247
        %v256 = vpack.c.b16 %v252, %v248
        %v257 = vpack.c.b16 %v253, %v249
        %vm262 = vcmask 130048
        %v264 = vsel %vm262, %v240, 0
        %v267 = vsel %vm262, %v241, 0
        %269 = vmatprep.subr.bf16.mxu0 %v255
        %270 = vmatpush1.bf16.msra.mxu0 %v254
        %271 = vmatprep.subr.bf16.mxu0 0
        %272 = vmatpush1.bf16.msra.mxu0 0
        %273 = vmatprep.subr.bf16.mxu0 0
        %274 = vmatpush1.bf16.msra.mxu0 0
        %275 = vmatprep.subr.bf16.mxu0 0
        %276 = vmatpush1.bf16.msra.mxu0 0
        %277 = vmatprep.subr.bf16.mxu0 0
        %278 = vmatpush1.bf16.msra.mxu0 0
        %279 = vmatprep.subr.bf16.mxu0 0
        %280 = vmatpush1.bf16.msra.mxu0 0
        %281 = vmatprep.subr.bf16.mxu0 0
        %282 = vmatpush1.bf16.msra.mxu0 0
        %283 = vmatprep.subr.bf16.mxu0 0
        %284 = vmatpush1.bf16.msra.mxu0 0
        %285 = vmatprep.subr.bf16.mxu0 0
        %286 = vmatpush1.bf16.msra.mxu0 0
        %287 = vmatprep.subr.bf16.mxu0 0
        %288 = vmatpush1.bf16.msra.mxu0 0
        %289 = vmatprep.subr.bf16.mxu0 0
        %290 = vmatpush1.bf16.msra.mxu0 0
        %291 = vmatprep.subr.bf16.mxu0 0
        %292 = vmatpush1.bf16.msra.mxu0 0
        %293 = vmatprep.subr.bf16.mxu0 0
        %294 = vmatpush1.bf16.msra.mxu0 0
        %295 = vmatprep.subr.bf16.mxu0 0
        %296 = vmatpush1.bf16.msra.mxu0 0
        %297 = vmatprep.subr.bf16.mxu0 0
        %298 = vmatpush1.bf16.msra.mxu0 0
        %299 = vmatprep.subr.bf16.mxu0 0
        %300 = vmatpush1.bf16.msra.mxu0 0
        %301 = vmatprep.mubr.bf16.mxu0 0
        %302 = vmatmul.mubr.bf16.gmra.mrb[0].mxu0 %v264
        %v303 = vpop.f32.mrb[0].mxu0
        %v304 = vadd.f32 %v215, %v303
        %v305 = vpop.f32.mrb[0].mxu0
        %v306 = vadd.f32 %v215, %v305
        %v307 = vpop.f32.mrb[0].mxu0
        %v308 = vadd.f32 %v220, %v307
        %v309 = vpop.f32.mrb[0].mxu0
        %v310 = vadd.f32 %v220, %v309
        %311 = vmatprep.mubr.bf16.mxu0 0
        %312 = vmatmul.mubr.bf16.gmra.mrb[0].mxu0 %v267
        %v313 = vpop.f32.mrb[0].mxu0
        %v314 = vadd.f32 %v225, %v313
        %v315 = vpop.f32.mrb[0].mxu0
        %v316 = vadd.f32 %v225, %v315
        %v317 = vpop.f32.mrb[0].mxu0
        %v318 = vadd.f32 %v230, %v317
        %v319 = vpop.f32.mrb[0].mxu0
        %v320 = vadd.f32 %v230, %v319
        %321 = vdwg.mxu0
        %322 = vmatprep.subr.bf16.mxu0 %v257
        %323 = vmatpush1.bf16.msra.mxu0 %v256
        %324 = vmatprep.subr.bf16.mxu0 0
        %325 = vmatpush1.bf16.msra.mxu0 0
        %326 = vmatprep.subr.bf16.mxu0 0
        %327 = vmatpush1.bf16.msra.mxu0 0
        %328 = vmatprep.subr.bf16.mxu0 0
        %329 = vmatpush1.bf16.msra.mxu0 0
        %330 = vmatprep.subr.bf16.mxu0 0
        %331 = vmatpush1.bf16.msra.mxu0 0
        %332 = vmatprep.subr.bf16.mxu0 0
        %333 = vmatpush1.bf16.msra.mxu0 0
        %334 = vmatprep.subr.bf16.mxu0 0
        %335 = vmatpush1.bf16.msra.mxu0 0
        %336 = vmatprep.subr.bf16.mxu0 0
        %337 = vmatpush1.bf16.msra.mxu0 0
        %338 = vmatprep.subr.bf16.mxu0 0
        %339 = vmatpush1.bf16.msra.mxu0 0
        %340 = vmatprep.subr.bf16.mxu0 0
        %341 = vmatpush1.bf16.msra.mxu0 0
        %342 = vmatprep.subr.bf16.mxu0 0
        %343 = vmatpush1.bf16.msra.mxu0 0
        %344 = vmatprep.subr.bf16.mxu0 0
        %345 = vmatpush1.bf16.msra.mxu0 0
        %346 = vmatprep.subr.bf16.mxu0 0
        %347 = vmatpush1.bf16.msra.mxu0 0
        %348 = vmatprep.subr.bf16.mxu0 0
        %349 = vmatpush1.bf16.msra.mxu0 0
        %350 = vmatprep.subr.bf16.mxu0 0
        %351 = vmatpush1.bf16.msra.mxu0 0
        %352 = vmatprep.subr.bf16.mxu0 0
        %353 = vmatpush1.bf16.msra.mxu0 0
        %354 = vmatprep.mubr.bf16.mxu0 0
        %355 = vmatmul.mubr.bf16.gmra.mrb[0].mxu0 %v264
        %v356 = vpop.f32.mrb[0].mxu0
        %v357 = vadd.f32 %v215, %v356
        %v358 = vpop.f32.mrb[0].mxu0
        %v359 = vadd.f32 %v215, %v358
        %v360 = vpop.f32.mrb[0].mxu0
        %v361 = vadd.f32 %v220, %v360
        %v362 = vpop.f32.mrb[0].mxu0
        %v363 = vadd.f32 %v220, %v362
        %364 = vmatprep.mubr.bf16.mxu0 0
        %365 = vmatmul.mubr.bf16.gmra.mrb[0].mxu0 %v267
        %v366 = vpop.f32.mrb[0].mxu0
        %v367 = vadd.f32 %v225, %v366
        %v368 = vpop.f32.mrb[0].mxu0
        %v369 = vadd.f32 %v225, %v368
        %v370 = vpop.f32.mrb[0].mxu0
        %v371 = vadd.f32 %v230, %v370
        %v372 = vpop.f32.mrb[0].mxu0
        %v373 = vadd.f32 %v230, %v372
        %374 = vdwg.mxu0
        %v375 = vmax.f32 %v304, 0.0
        %v376 = vmax.f32 %v306, 0.0
        %v377 = vmax.f32 %v357, 0.0
        %v378 = vmax.f32 %v359, 0.0
        %v379 = vmax.f32 %v308, 0.0
        %v380 = vmax.f32 %v310, 0.0
        %v381 = vmax.f32 %v361, 0.0
        %v382 = vmax.f32 %v363, 0.0
        %v383 = vmax.f32 %v314, 0.0
        %v384 = vmax.f32 %v316, 0.0
        %v385 = vmax.f32 %v367, 0.0
        %v386 = vmax.f32 %v369, 0.0
        %v387 = vmax.f32 %v318, 0.0
        %v388 = vmax.f32 %v320, 0.0
        %v389 = vmax.f32 %v371, 0.0
        %v390 = vmax.f32 %v373, 0.0
        %v391 = vpack.c.bf16 %v379, %v375
        %v392 = vpack.c.bf16 %v380, %v376
        %v393 = vpack.c.bf16 %v381, %v377
        %v394 = vpack.c.bf16 %v382, %v378
        %v395 = vpack.c.bf16 %v387, %v383
        %v396 = vpack.c.bf16 %v388, %v384
        %v397 = vpack.c.bf16 %v389, %v385
        %v398 = vpack.c.bf16 %v390, %v386
        %s399 = scalar_lea.vmem %s1, 16
        %v400 = vld [vmem:[%s399] sm:$0xf]
        %v401 = vld [vmem:[%s399 + $0x4] sm:$0xf]
        %v402 = vld [vmem:[%s399 + $0x8] sm:$0xf]
        %v403 = vld [vmem:[%s399 + $0xc] sm:$0xf]
        %s404 = scalar_lea.vmem %s2, 32
        %v405 = vld [vmem:[%s404] sm:$0xff]
        %v406 = vld [vmem:[%s404 + $0x8] sm:$0xff]
        %v407 = vld [vmem:[%s404 + $0x10] sm:$0xff]
        %v408 = vld [vmem:[%s404 + $0x18] sm:$0xff]
        %410 = vset.pattern.permute.xlu0 0
        %411 = vperm.xlu0 %410, %v405
        %v412 = vpop.permute.xlu0 %411
        %415 = vset.pattern.permute.xlu0 0
        %416 = vperm.xlu0 %415, %v406
        %v417 = vpop.permute.xlu0 %416
        %420 = vset.pattern.permute.xlu0 0
        %421 = vperm.xlu0 %420, %v407
        %v422 = vpop.permute.xlu0 %421
        %425 = vset.pattern.permute.xlu0 0
        %426 = vperm.xlu0 %425, %v408
        %v427 = vpop.permute.xlu0 %426
        %v433 = vunpack.c.l.b16 %v400
        %v434 = vunpack.c.l.b16 %v401
        %v435 = vunpack.c.l.b16 %v402
        %v436 = vunpack.c.l.b16 %v403
        %v437 = vpack.c.b16 %v434, %v433
        %v438 = vpack.c.b16 %v436, %v435
        %vm439 = vcmask 261120
        %v441 = vsel %vm439, %v437, 0
        %v444 = vsel %vm439, %v438, 0
        %446 = vmatprep.subr.bf16.mxu0 %v392
        %447 = vmatpush1.bf16.msra.mxu0 %v391
        %448 = vmatprep.subr.bf16.mxu0 %v396
        %449 = vmatpush1.bf16.msra.mxu0 %v395
        %450 = vmatprep.subr.bf16.mxu0 0
        %451 = vmatpush1.bf16.msra.mxu0 0
        %452 = vmatprep.subr.bf16.mxu0 0
        %453 = vmatpush1.bf16.msra.mxu0 0
        %454 = vmatprep.subr.bf16.mxu0 0
        %455 = vmatpush1.bf16.msra.mxu0 0
        %456 = vmatprep.subr.bf16.mxu0 0
        %457 = vmatpush1.bf16.msra.mxu0 0
        %458 = vmatprep.subr.bf16.mxu0 0
        %459 = vmatpush1.bf16.msra.mxu0 0
        %460 = vmatprep.subr.bf16.mxu0 0
        %461 = vmatpush1.bf16.msra.mxu0 0
        %462 = vmatprep.subr.bf16.mxu0 0
        %463 = vmatpush1.bf16.msra.mxu0 0
        %464 = vmatprep.subr.bf16.mxu0 0
        %465 = vmatpush1.bf16.msra.mxu0 0
        %466 = vmatprep.subr.bf16.mxu0 0
        %467 = vmatpush1.bf16.msra.mxu0 0
        %468 = vmatprep.subr.bf16.mxu0 0
        %469 = vmatpush1.bf16.msra.mxu0 0
        %470 = vmatprep.subr.bf16.mxu0 0
        %471 = vmatpush1.bf16.msra.mxu0 0
        %472 = vmatprep.subr.bf16.mxu0 0
        %473 = vmatpush1.bf16.msra.mxu0 0
        %474 = vmatprep.subr.bf16.mxu0 0
        %475 = vmatpush1.bf16.msra.mxu0 0
        %476 = vmatprep.subr.bf16.mxu0 0
        %477 = vmatpush1.bf16.msra.mxu0 0
        %478 = vmatprep.mubr.bf16.mxu0 0
        %479 = vmatmul.mubr.bf16.gmra.mrb[0].mxu0 %v441
        %v480 = vpop.f32.mrb[0].mxu0
        %v481 = vadd.f32 %v412, %v480
        %v482 = vpop.f32.mrb[0].mxu0
        %v483 = vadd.f32 %v412, %v482
        %v484 = vpop.f32.mrb[0].mxu0
        %v485 = vadd.f32 %v417, %v484
        %v486 = vpop.f32.mrb[0].mxu0
        %v487 = vadd.f32 %v417, %v486
        %488 = vmatprep.mubr.bf16.mxu0 0
        %489 = vmatmul.mubr.bf16.gmra.mrb[0].mxu0 %v444
        %v490 = vpop.f32.mrb[0].mxu0
        %v491 = vadd.f32 %v422, %v490
        %v492 = vpop.f32.mrb[0].mxu0
        %v493 = vadd.f32 %v422, %v492
        %v494 = vpop.f32.mrb[0].mxu0
        %v495 = vadd.f32 %v427, %v494
        %v496 = vpop.f32.mrb[0].mxu0
        %v497 = vadd.f32 %v427, %v496
        %498 = vdwg.mxu0
        %499 = vmatprep.subr.bf16.mxu0 %v394
        %500 = vmatpush1.bf16.msra.mxu0 %v393
        %501 = vmatprep.subr.bf16.mxu0 %v398
        %502 = vmatpush1.bf16.msra.mxu0 %v397
        %503 = vmatprep.subr.bf16.mxu0 0
        %504 = vmatpush1.bf16.msra.mxu0 0
        %505 = vmatprep.subr.bf16.mxu0 0
        %506 = vmatpush1.bf16.msra.mxu0 0
        %507 = vmatprep.subr.bf16.mxu0 0
        %508 = vmatpush1.bf16.msra.mxu0 0
        %509 = vmatprep.subr.bf16.mxu0 0
        %510 = vmatpush1.bf16.msra.mxu0 0
        %511 = vmatprep.subr.bf16.mxu0 0
        %512 = vmatpush1.bf16.msra.mxu0 0
        %513 = vmatprep.subr.bf16.mxu0 0
        %514 = vmatpush1.bf16.msra.mxu0 0
        %515 = vmatprep.subr.bf16.mxu0 0
        %516 = vmatpush1.bf16.msra.mxu0 0
        %517 = vmatprep.subr.bf16.mxu0 0
        %518 = vmatpush1.bf16.msra.mxu0 0
        %519 = vmatprep.subr.bf16.mxu0 0
        %520 = vmatpush1.bf16.msra.mxu0 0
        %521 = vmatprep.subr.bf16.mxu0 0
        %522 = vmatpush1.bf16.msra.mxu0 0
        %523 = vmatprep.subr.bf16.mxu0 0
        %524 = vmatpush1.bf16.msra.mxu0 0
        %525 = vmatprep.subr.bf16.mxu0 0
        %526 = vmatpush1.bf16.msra.mxu0 0
        %527 = vmatprep.subr.bf16.mxu0 0
        %528 = vmatpush1.bf16.msra.mxu0 0
        %529 = vmatprep.subr.bf16.mxu0 0
        %530 = vmatpush1.bf16.msra.mxu0 0
        %531 = vmatprep.mubr.bf16.mxu0 0
        %532 = vmatmul.mubr.bf16.gmra.mrb[0].mxu0 %v441
        %v533 = vpop.f32.mrb[0].mxu0
        %v534 = vadd.f32 %v412, %v533
        %v535 = vpop.f32.mrb[0].mxu0
        %v536 = vadd.f32 %v412, %v535
        %v537 = vpop.f32.mrb[0].mxu0
        %v538 = vadd.f32 %v417, %v537
        %v539 = vpop.f32.mrb[0].mxu0
        %v540 = vadd.f32 %v417, %v539
        %541 = vmatprep.mubr.bf16.mxu0 0
        %542 = vmatmul.mubr.bf16.gmra.mrb[0].mxu0 %v444
        %v543 = vpop.f32.mrb[0].mxu0
        %v544 = vadd.f32 %v422, %v543
        %v545 = vpop.f32.mrb[0].mxu0
        %v546 = vadd.f32 %v422, %v545
        %v547 = vpop.f32.mrb[0].mxu0
        %v548 = vadd.f32 %v427, %v547
        %v549 = vpop.f32.mrb[0].mxu0
        %v550 = vadd.f32 %v427, %v549
        %551 = vdwg.mxu0
        %v552 = vmax.f32 %v481, 0.0
        %v553 = vmax.f32 %v483, 0.0
        %v554 = vmax.f32 %v534, 0.0
        %v555 = vmax.f32 %v536, 0.0
        %v556 = vmax.f32 %v485, 0.0
        %v557 = vmax.f32 %v487, 0.0
        %v558 = vmax.f32 %v538, 0.0
        %v559 = vmax.f32 %v540, 0.0
        %v560 = vmax.f32 %v491, 0.0
        %v561 = vmax.f32 %v493, 0.0
        %v562 = vmax.f32 %v544, 0.0
        %v563 = vmax.f32 %v546, 0.0
        %v564 = vmax.f32 %v495, 0.0
        %v565 = vmax.f32 %v497, 0.0
        %v566 = vmax.f32 %v548, 0.0
        %v567 = vmax.f32 %v550, 0.0
        %v568 = vpack.c.bf16 %v556, %v552
        %v569 = vpack.c.bf16 %v557, %v553
        %v570 = vpack.c.bf16 %v558, %v554
        %v571 = vpack.c.bf16 %v559, %v555
        %v572 = vpack.c.bf16 %v564, %v560
        %v573 = vpack.c.bf16 %v565, %v561
        %v574 = vpack.c.bf16 %v566, %v562
        %v575 = vpack.c.bf16 %v567, %v563
        %s576 = scalar_lea.vmem %s1, 32
        %v577 = vld [vmem:[%s576] sm:$0xf]
        %v578 = vld [vmem:[%s576 + $0x4] sm:$0xf]
        %v579 = vld [vmem:[%s576 + $0x8] sm:$0xf]
        %v580 = vld [vmem:[%s576 + $0xc] sm:$0xf]
        %s581 = scalar_lea.vmem %s2, 64
        %v582 = vld [vmem:[%s581] sm:$0xff]
        %v583 = vld [vmem:[%s581 + $0x8] sm:$0xff]
        %v584 = vld [vmem:[%s581 + $0x10] sm:$0xff]
        %v585 = vld [vmem:[%s581 + $0x18] sm:$0xff]
        %587 = vset.pattern.permute.xlu0 0
        %588 = vperm.xlu0 %587, %v582
        %v589 = vpop.permute.xlu0 %588
        %592 = vset.pattern.permute.xlu0 0
        %593 = vperm.xlu0 %592, %v583
        %v594 = vpop.permute.xlu0 %593
        %597 = vset.pattern.permute.xlu0 0
        %598 = vperm.xlu0 %597, %v584
        %v599 = vpop.permute.xlu0 %598
        %602 = vset.pattern.permute.xlu0 0
        %603 = vperm.xlu0 %602, %v585
        %v604 = vpop.permute.xlu0 %603
        %v610 = vunpack.c.l.b16 %v577
        %v611 = vunpack.c.l.b16 %v578
        %v612 = vunpack.c.l.b16 %v579
        %v613 = vunpack.c.l.b16 %v580
        %v614 = vpack.c.b16 %v611, %v610
        %v615 = vpack.c.b16 %v613, %v612
        %v617 = vsel %vm439, %v614, 0
        %v620 = vsel %vm439, %v615, 0
        %622 = vmatprep.subr.bf16.mxu0 %v569
        %623 = vmatpush1.bf16.msra.mxu0 %v568
        %624 = vmatprep.subr.bf16.mxu0 %v573
        %625 = vmatpush1.bf16.msra.mxu0 %v572
        %626 = vmatprep.subr.bf16.mxu0 0
        %627 = vmatpush1.bf16.msra.mxu0 0
        %628 = vmatprep.subr.bf16.mxu0 0
        %629 = vmatpush1.bf16.msra.mxu0 0
        %630 = vmatprep.subr.bf16.mxu0 0
        %631 = vmatpush1.bf16.msra.mxu0 0
        %632 = vmatprep.subr.bf16.mxu0 0
        %633 = vmatpush1.bf16.msra.mxu0 0
        %634 = vmatprep.subr.bf16.mxu0 0
        %635 = vmatpush1.bf16.msra.mxu0 0
        %636 = vmatprep.subr.bf16.mxu0 0
        %637 = vmatpush1.bf16.msra.mxu0 0
        %638 = vmatprep.subr.bf16.mxu0 0
        %639 = vmatpush1.bf16.msra.mxu0 0
        %640 = vmatprep.subr.bf16.mxu0 0
        %641 = vmatpush1.bf16.msra.mxu0 0
        %642 = vmatprep.subr.bf16.mxu0 0
        %643 = vmatpush1.bf16.msra.mxu0 0
        %644 = vmatprep.subr.bf16.mxu0 0
        %645 = vmatpush1.bf16.msra.mxu0 0
        %646 = vmatprep.subr.bf16.mxu0 0
        %647 = vmatpush1.bf16.msra.mxu0 0
        %648 = vmatprep.subr.bf16.mxu0 0
        %649 = vmatpush1.bf16.msra.mxu0 0
        %650 = vmatprep.subr.bf16.mxu0 0
        %651 = vmatpush1.bf16.msra.mxu0 0
        %652 = vmatprep.subr.bf16.mxu0 0
        %653 = vmatpush1.bf16.msra.mxu0 0
        %654 = vmatprep.mubr.bf16.mxu0 0
        %655 = vmatmul.mubr.bf16.gmra.mrb[0].mxu0 %v617
        %v656 = vpop.f32.mrb[0].mxu0
        %v657 = vadd.f32 %v589, %v656
        %v658 = vpop.f32.mrb[0].mxu0
        %v659 = vadd.f32 %v589, %v658
        %v660 = vpop.f32.mrb[0].mxu0
        %v661 = vadd.f32 %v594, %v660
        %v662 = vpop.f32.mrb[0].mxu0
        %v663 = vadd.f32 %v594, %v662
        %664 = vmatprep.mubr.bf16.mxu0 0
        %665 = vmatmul.mubr.bf16.gmra.mrb[0].mxu0 %v620
        %v666 = vpop.f32.mrb[0].mxu0
        %v667 = vadd.f32 %v599, %v666
        %v668 = vpop.f32.mrb[0].mxu0
        %v669 = vadd.f32 %v599, %v668
        %v670 = vpop.f32.mrb[0].mxu0
        %v671 = vadd.f32 %v604, %v670
        %v672 = vpop.f32.mrb[0].mxu0
        %v673 = vadd.f32 %v604, %v672
        %674 = vdwg.mxu0
        %675 = vmatprep.subr.bf16.mxu0 %v571
        %676 = vmatpush1.bf16.msra.mxu0 %v570
        %677 = vmatprep.subr.bf16.mxu0 %v575
        %678 = vmatpush1.bf16.msra.mxu0 %v574
        %679 = vmatprep.subr.bf16.mxu0 0
        %680 = vmatpush1.bf16.msra.mxu0 0
        %681 = vmatprep.subr.bf16.mxu0 0
        %682 = vmatpush1.bf16.msra.mxu0 0
        %683 = vmatprep.subr.bf16.mxu0 0
        %684 = vmatpush1.bf16.msra.mxu0 0
        %685 = vmatprep.subr.bf16.mxu0 0
        %686 = vmatpush1.bf16.msra.mxu0 0
        %687 = vmatprep.subr.bf16.mxu0 0
        %688 = vmatpush1.bf16.msra.mxu0 0
        %689 = vmatprep.subr.bf16.mxu0 0
        %690 = vmatpush1.bf16.msra.mxu0 0
        %691 = vmatprep.subr.bf16.mxu0 0
        %692 = vmatpush1.bf16.msra.mxu0 0
        %693 = vmatprep.subr.bf16.mxu0 0
        %694 = vmatpush1.bf16.msra.mxu0 0
        %695 = vmatprep.subr.bf16.mxu0 0
        %696 = vmatpush1.bf16.msra.mxu0 0
        %697 = vmatprep.subr.bf16.mxu0 0
        %698 = vmatpush1.bf16.msra.mxu0 0
        %699 = vmatprep.subr.bf16.mxu0 0
        %700 = vmatpush1.bf16.msra.mxu0 0
        %701 = vmatprep.subr.bf16.mxu0 0
        %702 = vmatpush1.bf16.msra.mxu0 0
        %703 = vmatprep.subr.bf16.mxu0 0
        %704 = vmatpush1.bf16.msra.mxu0 0
        %705 = vmatprep.subr.bf16.mxu0 0
        %706 = vmatpush1.bf16.msra.mxu0 0
        %707 = vmatprep.mubr.bf16.mxu0 0
        %708 = vmatmul.mubr.bf16.gmra.mrb[0].mxu0 %v617
        %v709 = vpop.f32.mrb[0].mxu0
        %v710 = vadd.f32 %v589, %v709
        %v711 = vpop.f32.mrb[0].mxu0
        %v712 = vadd.f32 %v589, %v711
        %v713 = vpop.f32.mrb[0].mxu0
        %v714 = vadd.f32 %v594, %v713
        %v715 = vpop.f32.mrb[0].mxu0
        %v716 = vadd.f32 %v594, %v715
        %717 = vmatprep.mubr.bf16.mxu0 0
        %718 = vmatmul.mubr.bf16.gmra.mrb[0].mxu0 %v620
        %v719 = vpop.f32.mrb[0].mxu0
        %v720 = vadd.f32 %v599, %v719
        %v721 = vpop.f32.mrb[0].mxu0
        %v722 = vadd.f32 %v599, %v721
        %v723 = vpop.f32.mrb[0].mxu0
        %v724 = vadd.f32 %v604, %v723
        %v725 = vpop.f32.mrb[0].mxu0
        %v726 = vadd.f32 %v604, %v725
        %727 = vdwg.mxu0
        %v728 = vmax.f32 %v657, 0.0
        %v729 = vmax.f32 %v659, 0.0
        %v730 = vmax.f32 %v710, 0.0
        %v731 = vmax.f32 %v712, 0.0
        %v732 = vmax.f32 %v661, 0.0
        %v733 = vmax.f32 %v663, 0.0
        %v734 = vmax.f32 %v714, 0.0
        %v735 = vmax.f32 %v716, 0.0
        %v736 = vmax.f32 %v667, 0.0
        %v737 = vmax.f32 %v669, 0.0
        %v738 = vmax.f32 %v720, 0.0
        %v739 = vmax.f32 %v722, 0.0
        %v740 = vmax.f32 %v671, 0.0
        %v741 = vmax.f32 %v673, 0.0
        %v742 = vmax.f32 %v724, 0.0
        %v743 = vmax.f32 %v726, 0.0
        %v744 = vpack.c.bf16 %v732, %v728
        %v745 = vpack.c.bf16 %v733, %v729
        %v746 = vpack.c.bf16 %v734, %v730
        %v747 = vpack.c.bf16 %v735, %v731
        %v748 = vpack.c.bf16 %v740, %v736
        %v749 = vpack.c.bf16 %v741, %v737
        %v750 = vpack.c.bf16 %v742, %v738
        %v751 = vpack.c.bf16 %v743, %v739
        %s752 = scalar_lea.vmem %s1, 48
        %v753 = vld [vmem:[%s752] sm:$0xf]
        %v754 = vld [vmem:[%s752 + $0x4] sm:$0xf]
        %v755 = vld [vmem:[%s752 + $0x8] sm:$0xf]
        %v756 = vld [vmem:[%s752 + $0xc] sm:$0xf]
        %s757 = scalar_lea.vmem %s2, 96
        %v758 = vld [vmem:[%s757] sm:$0xff]
        %v759 = vld [vmem:[%s757 + $0x8] sm:$0xff]
        %v760 = vld [vmem:[%s757 + $0x10] sm:$0xff]
        %v761 = vld [vmem:[%s757 + $0x18] sm:$0xff]
        %763 = vset.pattern.permute.xlu0 0
        %764 = vperm.xlu0 %763, %v758
        %v765 = vpop.permute.xlu0 %764
        %768 = vset.pattern.permute.xlu0 0
        %769 = vperm.xlu0 %768, %v759
        %v770 = vpop.permute.xlu0 %769
        %772 = vset.pattern.permute.xlu0 0
        %773 = vperm.xlu0 %772, %v760
        %v774 = vpop.permute.xlu0 %773
        %776 = vset.pattern.permute.xlu0 0
        %777 = vperm.xlu0 %776, %v761
        %v778 = vpop.permute.xlu0 %777
        %v783 = vunpack.c.l.b16 %v753
        %v784 = vunpack.c.l.b16 %v754
        %v785 = vunpack.c.l.b16 %v755
        %v786 = vunpack.c.l.b16 %v756
        %v787 = vpack.c.b16 %v784, %v783
        %v788 = vpack.c.b16 %v786, %v785
        %v790 = vsel %vm439, %v787, 0
        %v793 = vsel %vm439, %v788, 0
        %795 = vmatprep.subr.bf16.mxu0 %v745
        %796 = vmatpush1.bf16.msra.mxu0 %v744
        %797 = vmatprep.subr.bf16.mxu0 %v749
        %798 = vmatpush1.bf16.msra.mxu0 %v748
        %799 = vmatprep.subr.bf16.mxu0 0
        %800 = vmatpush1.bf16.msra.mxu0 0
        %801 = vmatprep.subr.bf16.mxu0 0
        %802 = vmatpush1.bf16.msra.mxu0 0
        %803 = vmatprep.subr.bf16.mxu0 0
        %804 = vmatpush1.bf16.msra.mxu0 0
        %805 = vmatprep.subr.bf16.mxu0 0
        %806 = vmatpush1.bf16.msra.mxu0 0
        %807 = vmatprep.subr.bf16.mxu0 0
        %808 = vmatpush1.bf16.msra.mxu0 0
        %809 = vmatprep.subr.bf16.mxu0 0
        %810 = vmatpush1.bf16.msra.mxu0 0
        %811 = vmatprep.subr.bf16.mxu0 0
        %812 = vmatpush1.bf16.msra.mxu0 0
        %813 = vmatprep.subr.bf16.mxu0 0
        %814 = vmatpush1.bf16.msra.mxu0 0
        %815 = vmatprep.subr.bf16.mxu0 0
        %816 = vmatpush1.bf16.msra.mxu0 0
        %817 = vmatprep.subr.bf16.mxu0 0
        %818 = vmatpush1.bf16.msra.mxu0 0
        %819 = vmatprep.subr.bf16.mxu0 0
        %820 = vmatpush1.bf16.msra.mxu0 0
        %821 = vmatprep.subr.bf16.mxu0 0
        %822 = vmatpush1.bf16.msra.mxu0 0
        %823 = vmatprep.subr.bf16.mxu0 0
        %824 = vmatpush1.bf16.msra.mxu0 0
        %825 = vmatprep.subr.bf16.mxu0 0
        %826 = vmatpush1.bf16.msra.mxu0 0
        %827 = vmatprep.mubr.bf16.mxu0 0
        %828 = vmatmul.mubr.bf16.gmra.mrb[0].mxu0 %v790
        %v829 = vpop.f32.mrb[0].mxu0
        %v830 = vadd.f32 %v765, %v829
        %v831 = vpop.f32.mrb[0].mxu0
        %v832 = vadd.f32 %v765, %v831
        %v833 = vpop.f32.mrb[0].mxu0
        %v834 = vpop.f32.mrb[0].mxu0
        %835 = vmatprep.mubr.bf16.mxu0 0
        %836 = vmatmul.mubr.bf16.gmra.mrb[0].mxu0 %v793
        %v837 = vpop.f32.mrb[0].mxu0
        %v838 = vpop.f32.mrb[0].mxu0
        %v839 = vpop.f32.mrb[0].mxu0
        %v840 = vpop.f32.mrb[0].mxu0
        %841 = vdwg.mxu0
        %842 = vmatprep.subr.bf16.mxu0 %v747
        %843 = vmatpush1.bf16.msra.mxu0 %v746
        %844 = vmatprep.subr.bf16.mxu0 %v751
        %845 = vmatpush1.bf16.msra.mxu0 %v750
        %846 = vmatprep.subr.bf16.mxu0 0
        %847 = vmatpush1.bf16.msra.mxu0 0
        %848 = vmatprep.subr.bf16.mxu0 0
        %849 = vmatpush1.bf16.msra.mxu0 0
        %850 = vmatprep.subr.bf16.mxu0 0
        %851 = vmatpush1.bf16.msra.mxu0 0
        %852 = vmatprep.subr.bf16.mxu0 0
        %853 = vmatpush1.bf16.msra.mxu0 0
        %854 = vmatprep.subr.bf16.mxu0 0
        %855 = vmatpush1.bf16.msra.mxu0 0
        %856 = vmatprep.subr.bf16.mxu0 0
        %857 = vmatpush1.bf16.msra.mxu0 0
        %858 = vmatprep.subr.bf16.mxu0 0
        %859 = vmatpush1.bf16.msra.mxu0 0
        %860 = vmatprep.subr.bf16.mxu0 0
        %861 = vmatpush1.bf16.msra.mxu0 0
        %862 = vmatprep.subr.bf16.mxu0 0
        %863 = vmatpush1.bf16.msra.mxu0 0
        %864 = vmatprep.subr.bf16.mxu0 0
        %865 = vmatpush1.bf16.msra.mxu0 0
        %866 = vmatprep.subr.bf16.mxu0 0
        %867 = vmatpush1.bf16.msra.mxu0 0
        %868 = vmatprep.subr.bf16.mxu0 0
        %869 = vmatpush1.bf16.msra.mxu0 0
        %870 = vmatprep.subr.bf16.mxu0 0
        %871 = vmatpush1.bf16.msra.mxu0 0
        %872 = vmatprep.subr.bf16.mxu0 0
        %873 = vmatpush1.bf16.msra.mxu0 0
        %874 = vmatprep.mubr.bf16.mxu0 0
        %875 = vmatmul.mubr.bf16.gmra.mrb[0].mxu0 %v790
        %v876 = vpop.f32.mrb[0].mxu0
        %v877 = vadd.f32 %v765, %v876
        %v878 = vpop.f32.mrb[0].mxu0
        %v879 = vadd.f32 %v765, %v878
        %v880 = vpop.f32.mrb[0].mxu0
        %v881 = vpop.f32.mrb[0].mxu0
        %882 = vmatprep.mubr.bf16.mxu0 0
        %883 = vmatmul.mubr.bf16.gmra.mrb[0].mxu0 %v793
        %v884 = vpop.f32.mrb[0].mxu0
        %v885 = vpop.f32.mrb[0].mxu0
        %v886 = vpop.f32.mrb[0].mxu0
        %v887 = vpop.f32.mrb[0].mxu0
        %888 = vdwg.mxu0
        %889 = vst [vmem:[%s197] sm:$0xff] %v830
        %890 = vst [vmem:[%s197 + $0x8] sm:$0xff] %v832
        %891 = vst [vmem:[%s197 + $0x10] sm:$0xff] %v877
        %892 = vst [vmem:[%s197 + $0x18] sm:$0xff] %v879
        %s893 = smul.u32 4, %s14
        %p894 = scmp.lt.s32.totalorder %s893, 7
        %s895 = scalar_select %p894, %s893, 7
        %s896 = smul.addr %s895, 8
        %s897 = scalar_lea.vmem %s3, %s896
        // Predicated region
        $region56: #{_forward_impl.1} parent=50 // pred_check
          %p898 = pneg %p100
        $region57: #{_forward_impl.1} parent=50 // pred_check_branch
          %900 = sbr.rel (%p898) target = $region59
        $region58: #{_forward_impl.1} parent=50 // pred_region
          %s901 = smul.u32 4, %s14
        $region59: #{_forward_impl.1} parent=50 // pred_fallthru
          _
      $region51: #{_forward_impl.1} parent=5 // pred_fallthru
        _
      %p902 = scmp.le.s32.totalorder 2, %s9
      // Predicated region
      $region60: #{_forward_impl.1} parent=5 // pred_check
        %p903 = pneg %p902
      $region61: #{_forward_impl.1} parent=5 // pred_check_branch
        %905 = sbr.rel (%p903) target = $region63
      $region62: #{_forward_impl.1} parent=5 // pred_region
        %s906 = ssub.s32 %s9, 2
        // Predicated region
        $region64: #{_forward_impl.1} parent=62 // pred_check
          %p907 = pneg %p106
        $region65: #{_forward_impl.1} parent=62 // pred_check_branch
          %909 = sbr.rel (%p907) target = $region67
        $region66: #{_forward_impl.1} parent=62 // pred_region
          %s910 = smul.u32 4, %s15
          %p911 = scmp.lt.s32.totalorder %s910, 7
          %s912 = scalar_select %p911, %s910, 7
          %s913 = smul.addr %s912, 8
          %s914 = scalar_lea.vmem %s3, %s913
        $region67: #{_forward_impl.1} parent=62 // pred_fallthru
          _
      $region63: #{_forward_impl.1} parent=5 // pred_fallthru
        _
    $region6: #{_forward_impl.1} parent=1 // loop_footer
      %s13 = sadd.s32 1, %s9
    $region7: #{_forward_impl.1} parent=1 // loop_footer_branch
      %8 = sbr.rel target = $region3
    $region8: #{_forward_impl.1} parent=1 // loop_exit
      _

</llo_original>
